<compile_context>
chip_gen: v6e
topology: v6e:2x2x1
jax: 0.10.0
libtpu: 0.0.40
codegen_flags: <defaults>
</compile_context>

<pallas_src>
import jax
import jax.numpy as jnp
from jax import lax
from jax.experimental import pallas as pl
from jax.experimental.pallas import tpu as pltpu


def _round_up(x, m):
    return (x + m - 1) // m * m


def _sse_partial_kernel(feat_ref, labels_ref, w_ref, gamma_ref, out_ref):
    """Per-batch-tile sum of squared errors vs. the gathered (w * gamma) centers."""
    tile_b = feat_ref.shape[0]
    num_class = w_ref.shape[0]

    labels = labels_ref[...]                                        # (TB, 1) int32
    cls = lax.broadcasted_iota(jnp.int32, (tile_b, num_class), 1)   # (TB, C)
    hit = cls == labels                                             # (TB, C) bool
    # Padded rows carry label -1 -> all-zero one-hot row -> zero contribution.

    # Exact MXU row gather of fixed_weights in the caller's dtype (0/1 one-hot
    # is exactly representable in bf16/f32; accumulate in f32).
    one_hot_w = hit.astype(w_ref.dtype)                             # (TB, C)
    gathered_w = jnp.dot(one_hot_w, w_ref[...],
                         preferred_element_type=jnp.float32)        # (TB, D) f32

    # Exact per-row gamma gather (one nonzero per row -> exact lane reduce).
    gamma_b = jnp.sum(one_hot_w.astype(jnp.float32) * gamma_ref[...],
                      axis=-1, keepdims=True)                       # (TB, 1) f32

    diff = feat_ref[...].astype(jnp.float32) - gathered_w * gamma_b
    out_ref[...] = jnp.sum(diff * diff, keepdims=True).reshape(1, 1, 1)


def fixed_center_loss(feat, labels, fixed_weights, centers_gamma,
                      lambda1=0.005, lambda2=1.0, block_rows=None):
    """Pallas implementation of FixedCenterLoss.forward. Returns a scalar."""
    B, D = feat.shape
    C, Dw = fixed_weights.shape
    assert D == Dw
    assert centers_gamma.shape == (C, 1)
    assert labels.shape == (B,)
    assert C > 1, "inter-class loss is undefined for num_class == 1"

    labels = labels.astype(jnp.int32)
    gamma_f32 = centers_gamma.astype(jnp.float32)
    gamma_row = gamma_f32.reshape(1, C)

    feat_is = jnp.dtype(feat.dtype).itemsize
    w_is = jnp.dtype(fixed_weights.dtype).itemsize
    d_lanes = _round_up(D, 128)
    c_lanes = _round_up(C, 128)
    c_rows = _round_up(C, 8)
    pack = max(8, 32 // feat_is)          # sublane pack: 8 f32 / 16 bf16 / 32 int8

    # Physical-VMEM-aware budget (v7x: 64 MiB/TC; v5e/v6e: 128 MiB).
    try:
        phys_vmem = int(pltpu.get_tpu_info().vmem_capacity_bytes)
    except Exception:
        phys_vmem = 64 << 20
    vmem_cap = max(phys_vmem - (6 << 20), 32 << 20)

    def _vmem_bytes(tb):
        b = 2 * tb * d_lanes * feat_is        # feat tile, double-buffered
        b += 2 * tb * 128 * 4                 # labels tile (lane-padded), 2x
        b += 2 * c_rows * d_lanes * w_is      # fixed_weights (grid-invariant), 2x
        b += 2 * 8 * c_lanes * 4              # gamma row, 2x
        b += 2 * 8 * 128 * 4                  # (1,1,1) output block, 2x
        b += 2 * tb * c_lanes * 4             # iota / one-hot f32 intermediates
        b += 3 * tb * d_lanes * 4             # feat f32 / gathered_w / diff f32
        return b

    # Adaptive batch tile: ~2 MiB of feat bytes per buffer, shrink to VMEM budget.
    if block_rows is None:
        tile_b = max(pack, (2 << 20) // max(1, d_lanes * feat_is))
        tile_b = min(tile_b, 4096)
    else:
        tile_b = max(pack, block_rows)
    tile_b = min(tile_b, _round_up(B, pack))
    tile_b = _round_up(tile_b, pack)
    budget = (vmem_cap * 3) // 4
    while tile_b > pack and _vmem_bytes(tile_b) > budget:
        tile_b = max(pack, _round_up(tile_b // 2, pack))

    b_pad = _round_up(B, tile_b)
    if b_pad != B:
        feat = jnp.pad(feat, ((0, b_pad - B), (0, 0)))
        labels = jnp.pad(labels, (0, b_pad - B), constant_values=-1)
    labels2d = labels.reshape(b_pad, 1)
    num_tiles = b_pad // tile_b

    vmem_limit = int(min(vmem_cap, max(32 << 20, _vmem_bytes(tile_b) + (8 << 20))))

    cost = pl.CostEstimate(
        flops=int(2 * b_pad * C * D + 2 * b_pad * C + 4 * b_pad * D),
        transcendentals=0,
        bytes_accessed=int(feat_is * b_pad * D + 4 * b_pad
                           + w_is * C * D + 4 * C + 4 * num_tiles),
    )

    partials = pl.pallas_call(
        _sse_partial_kernel,
        out_shape=jax.ShapeDtypeStruct((num_tiles, 1, 1), jnp.float32),
        grid_spec=pltpu.PrefetchScalarGridSpec(
            num_scalar_prefetch=0,
            grid=(num_tiles,),
            in_specs=[
                pl.BlockSpec((tile_b, D), lambda i: (i, 0)),   # feat tile
                pl.BlockSpec((tile_b, 1), lambda i: (i, 0)),   # labels tile
                pl.BlockSpec((C, D), lambda i: (0, 0)),        # fixed_weights (caller dtype)
                pl.BlockSpec((1, C), lambda i: (0, 0)),        # gamma row (f32)
            ],
            out_specs=pl.BlockSpec((1, 1, 1), lambda i: (i, 0, 0)),
        ),
        compiler_params=pltpu.CompilerParams(
            dimension_semantics=("parallel",),     # per-tile partial sums; no carry
            vmem_limit_bytes=vmem_limit,
        ),
        cost_estimate=cost,
    )(feat, labels2d, fixed_weights, gamma_row)

    # Tiny epilogue in plain JAX: combine partials + gamma-only inter-class loss.
    loss1 = jnp.sum(partials) * (0.5 / B)
    tmp = jnp.sum(gamma_f32 * gamma_f32)
    s = jnp.sum(gamma_f32)
    L = 2.0 * (C - 1) * tmp + 2.0 * (s * s - tmp) / (C - 1)
    loss2 = (C * (C - 1)) / L
    return lambda1 * loss1 + lambda2 * loss2


def fixed_center_loss_ref(feat, labels, fixed_weights, centers_gamma,
                          lambda1=0.005, lambda2=1.0):
    """Pure-JAX reference mirroring the PyTorch forward semantics."""
    B = labels.shape[0]
    C = fixed_weights.shape[0]
    feat = feat.astype(jnp.float32)
    fixed_weights = fixed_weights.astype(jnp.float32)
    centers_gamma = centers_gamma.astype(jnp.float32)
    centers = fixed_weights * centers_gamma                  # [C, D]
    centers_batch = centers[labels]                          # [B, D]
    loss1 = jnp.sum((feat - centers_batch) ** 2) * 0.5 / B
    tmp = jnp.sum(centers_gamma ** 2)
    mm = jnp.sum(centers_gamma @ centers_gamma.T)
    L = 2.0 * (C - 1) * tmp + 2.0 * (mm - tmp) / (C - 1)
    loss2 = C * (C - 1) / L
    return lambda1 * loss1 + lambda2 * loss2


if __name__ == "__main__":
    key = jax.random.PRNGKey(0)

    # Case 1: small shapes consistent with the module (batch=8, D=32, C=4).
    B, D, C = 8, 32, 4
    k_feat, k_w, k_lbl = jax.random.split(key, 3)
    feat = jax.random.normal(k_feat, (B, D), dtype=jnp.float32)
    fixed_weights = jax.random.normal(k_w, (C, D), dtype=jnp.float32)
    labels = jax.random.randint(k_lbl, (B,), 0, C, dtype=jnp.int32)
    centers_gamma = jnp.ones((C, 1), dtype=jnp.float32)   # nn.Parameter(ones(C,1))

    loss = fixed_center_loss(feat, labels, fixed_weights, centers_gamma)
    loss = jax.block_until_ready(loss)
    ref = fixed_center_loss_ref(feat, labels, fixed_weights, centers_gamma)
    assert jnp.allclose(loss, ref, rtol=1e-5, atol=1e-5), (loss, ref)

    # Case 2: padding + multi-tile parallel partial sums + non-unit gamma
    # (B=20 -> 3 tiles of 8 rows).
    B2, D2, C2 = 20, 128, 16
    k_f2, k_w2, k_l2, k_g2 = jax.random.split(jax.random.PRNGKey(0), 4)
    feat2 = jax.random.normal(k_f2, (B2, D2), dtype=jnp.float32)
    fixed_weights2 = jax.random.normal(k_w2, (C2, D2), dtype=jnp.float32)
    labels2 = jax.random.randint(k_l2, (B2,), 0, C2, dtype=jnp.int32)
    centers_gamma2 = 1.0 + 0.25 * jax.random.normal(k_g2, (C2, 1), dtype=jnp.float32)

    loss2v = fixed_center_loss(feat2, labels2, fixed_weights2, centers_gamma2,
                               block_rows=8)
    loss2v = jax.block_until_ready(loss2v)
    ref2 = fixed_center_loss_ref(feat2, labels2, fixed_weights2, centers_gamma2)
    assert jnp.allclose(loss2v, ref2, rtol=1e-5, atol=1e-5), (loss2v, ref2)

    # Case 3: bf16 caller dtype exercises the fast (exact) bf16 one-hot MXU gather.
    feat3 = feat.astype(jnp.bfloat16)
    fixed_weights3 = fixed_weights.astype(jnp.bfloat16)
    loss3 = fixed_center_loss(feat3, labels, fixed_weights3, centers_gamma)
    loss3 = jax.block_until_ready(loss3)
    ref3 = fixed_center_loss_ref(feat3, labels, fixed_weights3, centers_gamma)
    assert jnp.allclose(loss3, ref3, rtol=1e-5, atol=1e-5), (loss3, ref3)

    print("KERNEL_OK")
</pallas_src>

<mosaic_0001>
module attributes {stable_mosaic.version = 11 : i64} {
  func.func @_sse_partial_kernel(%arg0: i32, %arg1: memref<8x32xf32, #tpu.memory_space<vmem>>, %arg2: memref<8x1xi32, #tpu.memory_space<vmem>>, %arg3: memref<4x32xf32, #tpu.memory_space<vmem>>, %arg4: memref<1x4xf32, #tpu.memory_space<vmem>>, %arg5: memref<1x1x1xf32, #tpu.memory_space<vmem>>) attributes {dimension_semantics = [#tpu.dimension_semantics<parallel>], iteration_bounds = array<i64: 1>, scalar_prefetch = 0 : i64, scratch_operands = 0 : i64, tpu.core_type = #tpu.core_type<tc>, window_params = [{transform_indices = @transform_0, window_bounds = array<i64: 8, 32>}, {transform_indices = @transform_1, window_bounds = array<i64: 8, 1>}, {pipeline_mode = #tpu.pipeline_mode<synchronous>, transform_indices = @transform_2, window_bounds = array<i64: 4, 32>}, {pipeline_mode = #tpu.pipeline_mode<synchronous>, transform_indices = @transform_3, window_bounds = array<i64: 1, 4>}, {transform_indices = @transform_4, window_bounds = array<i64: 1, 1, 1>}]} {
    %c0 = arith.constant 0 : index
    %c0_0 = arith.constant 0 : index
    %0 = vector.load %arg2[%c0, %c0_0] : memref<8x1xi32, #tpu.memory_space<vmem>>, vector<8x1xi32>
    %1 = tpu.iota {dimensions = array<i32: 1>} : vector<8x4xi32>
    %2 = vector.broadcast %0 : vector<8x1xi32> to vector<8x4xi32>
    %3 = arith.cmpi eq, %1, %2 : vector<8x4xi32>
    %4 = arith.extui %3 : vector<8x4xi1> to vector<8x4xi32>
    %5 = arith.sitofp %4 : vector<8x4xi32> to vector<8x4xf32>
    %c0_1 = arith.constant 0 : index
    %c0_2 = arith.constant 0 : index
    %6 = vector.load %arg3[%c0_1, %c0_2] : memref<4x32xf32, #tpu.memory_space<vmem>>, vector<4x32xf32>
    %cst = arith.constant dense<0.000000e+00> : vector<8x32xf32>
    %7 = tpu.matmul %5, %6, %cst {dimension_numbers = #tpu.dot_dimension_numbers<[1], [0], [0], [1], [0, 0, 1, 1], [], []>} : vector<8x4xf32>, vector<4x32xf32>, vector<8x32xf32> -> vector<8x32xf32>
    %c0_3 = arith.constant 0 : index
    %c0_4 = arith.constant 0 : index
    %8 = vector.load %arg4[%c0_3, %c0_4] : memref<1x4xf32, #tpu.memory_space<vmem>>, vector<1x4xf32>
    %9 = vector.broadcast %8 : vector<1x4xf32> to vector<8x4xf32>
    %10 = arith.mulf %5, %9 : vector<8x4xf32>
    %cst_5 = arith.constant dense<0.000000e+00> : vector<8xf32>
    %11 = vector.multi_reduction <add>, %10, %cst_5 [1] : vector<8x4xf32> to vector<8xf32>
    %12 = vector.shape_cast %11 : vector<8xf32> to vector<8x1xf32>
    %c0_6 = arith.constant 0 : index
    %c0_7 = arith.constant 0 : index
    %13 = vector.load %arg1[%c0_6, %c0_7] : memref<8x32xf32, #tpu.memory_space<vmem>>, vector<8x32xf32>
    %14 = vector.broadcast %12 : vector<8x1xf32> to vector<8x32xf32>
    %15 = arith.mulf %7, %14 : vector<8x32xf32>
    %16 = arith.subf %13, %15 : vector<8x32xf32>
    %17 = arith.mulf %16, %16 : vector<8x32xf32>
    %18 = vector.shape_cast %17 : vector<8x32xf32> to vector<1x8x32xf32>
    %cst_8 = arith.constant dense<0.000000e+00> : vector<1xf32>
    %19 = vector.multi_reduction <add>, %18, %cst_8 [1, 2] : vector<1x8x32xf32> to vector<1xf32>
    %20 = vector.shape_cast %19 : vector<1xf32> to vector<1x1x1xf32>
    %21 = vector.extract %20[0, 0, 0] : f32 from vector<1x1x1xf32>
    %22 = vector.broadcast %21 : f32 to vector<1x1xf32>
    %23 = vector.shape_cast %22 : vector<1x1xf32> to vector<1x1x1xf32>
    %c0_9 = arith.constant 0 : index
    %c0_10 = arith.constant 0 : index
    %c0_11 = arith.constant 0 : index
    %24 = vector.load %arg5[%c0_9, %c0_10, %c0_11] : memref<1x1x1xf32, #tpu.memory_space<vmem>>, vector<1x1x1xf32>
    tpu.vector_store %arg5[%c0_9, %c0_10, %c0_11], %23 {strides = array<i32>} : memref<1x1x1xf32, #tpu.memory_space<vmem>>, vector<1x1x1xf32>,
    return
  }
  func.func @transform_0(%arg0: i32) -> (i32, i32) {
    %c0_i32 = arith.constant 0 : i32
    %c0_i32_0 = arith.constant 0 : i32
    return %arg0, %c0_i32 : i32, i32
  }
  func.func @transform_1(%arg0: i32) -> (i32, i32) {
    %c0_i32 = arith.constant 0 : i32
    %c0_i32_0 = arith.constant 0 : i32
    return %arg0, %c0_i32 : i32, i32
  }
  func.func @transform_2(%arg0: i32) -> (i32, i32) {
    %c0_i32 = arith.constant 0 : i32
    %c0_i32_0 = arith.constant 0 : i32
    %c0_i32_1 = arith.constant 0 : i32
    return %c0_i32, %c0_i32_0 : i32, i32
  }
  func.func @transform_3(%arg0: i32) -> (i32, i32) {
    %c0_i32 = arith.constant 0 : i32
    %c0_i32_0 = arith.constant 0 : i32
    %c0_i32_1 = arith.constant 0 : i32
    return %c0_i32, %c0_i32_0 : i32, i32
  }
  func.func @transform_4(%arg0: i32) -> (i32, i32, i32) {
    %c0_i32 = arith.constant 0 : i32
    %c0_i32_0 = arith.constant 0 : i32
    %c0_i32_1 = arith.constant 0 : i32
    return %arg0, %c0_i32, %c0_i32_0 : i32, i32, i32
  }
}

</mosaic_0001>

<llo_original>
// kernel: tpu_custom_call.1
$region0: #{tpu_custom_call.1}
  #allocation0 [shape = 'u32[]', space=smem, size = 0x4, offset = 0x4, fixed_abs, tag = 'smem constant byte address 0x4 - core index']
  #allocation1 [shape = 'u32[144,128]{1,0:T(1,128)}', space=vmem, size = 0x12000, scoped, tag = 'internal scratch']
  %s0 = inlined_call_operand.vmem [shape: f32[8,32], index: 0, kind: input, shape index: {}]
  %s1 = inlined_call_operand.vmem [shape: s32[8,1], index: 1, kind: input, shape index: {}]
  %s2 = inlined_call_operand.vmem [shape: f32[4,32], index: 2, kind: input, shape index: {}]
  %s3 = inlined_call_operand.vmem [shape: f32[1,4], index: 3, kind: input, shape index: {}]
  %s4 = inlined_call_operand.hbm [shape: f32[1,1,1], index: 4, kind: output, shape index: {}]
  %s5 = sld [smem:[#allocation0]]
  $region26: #{tpu_custom_call.1} parent=0
    _
  %s7 = ssub.s32 1, %s5
  %s8 = scalar_select 0, %s7, %s5
  $region1: #{tpu_custom_call.1} parent=0
    #allocation2 [shape = 'u8[512]{0}', space=vmem, size = 0x400, scoped, tag = 'output window, operand 0, single buffered']
    #allocation3 [shape = 's32[1]{0}', space=sflag, size = 0x4, scoped, tag = 'scoped memory for tpu_custom_call.1']
    %9 = vsyncpa [#allocation3], 0
    // Predicated region
    $region2: #{tpu_custom_call.1} parent=1 // pred_check
      _
    $region3: #{tpu_custom_call.1} parent=1 // pred_check_branch
      %11 = sbr.rel (0) target = $region5
    $region4: #{tpu_custom_call.1} parent=1 // pred_region
      _
    $region5: #{tpu_custom_call.1} parent=1 // pred_fallthru
      _
    // Predicated region
    $region6: #{tpu_custom_call.1} parent=1 // pred_check
      _
    $region7: #{tpu_custom_call.1} parent=1 // pred_check_branch
      %13 = sbr.rel (0) target = $region9
    $region8: #{tpu_custom_call.1} parent=1 // pred_region
      _
    $region9: #{tpu_custom_call.1} parent=1 // pred_fallthru
      _
    // Predicated region
    $region10: #{tpu_custom_call.1} parent=1 // pred_check
      _
    $region11: #{tpu_custom_call.1} parent=1 // pred_check_branch
      %15 = sbr.rel (0) target = $region13
    $region12: #{tpu_custom_call.1} parent=1 // pred_region
      _
    $region13: #{tpu_custom_call.1} parent=1 // pred_fallthru
      _
    // Predicated region
    $region14: #{tpu_custom_call.1} parent=1 // pred_check
      _
    $region15: #{tpu_custom_call.1} parent=1 // pred_check_branch
      %17 = sbr.rel (0) target = $region17
    $region16: #{tpu_custom_call.1} parent=1 // pred_region
      _
    $region17: #{tpu_custom_call.1} parent=1 // pred_fallthru
      _
    %v18 = vld [vmem:[%s1] sm:$0xff]
    %v19 = vlaneseq
    %v20 = vand.u32 %v19, 127
    %21 = vset.pattern.permute.xlu0 0
    %22 = vperm.xlu0 %21, %v18
    %v23 = vpop.permute.xlu0 %22
    %vm24 = vcmp.eq.s32.totalorder %v20, %v23
    %v25 = vsel %vm24, 1, 0
    %v26 = vcvt.s32.f32 %v25
    %v27 = vld [vmem:[%s2] sm:$0xf]
    %vm28 = vcmask 31744
    %v30 = vsel %vm28, %v26, 0
    %vm32 = vcmask 1043456
    %v34 = vsel %vm32, %v27, 0
    %36 = vmatprep.subr.mxu0 0.0
    %37 = vmatpush1.msra.mxu0 0.0
    %38 = vmatprep.subr.mxu0 0.0
    %39 = vmatpush1.msra.mxu0 0.0
    %40 = vmatprep.subr.mxu0 0.0
    %41 = vmatpush1.msra.mxu0 0.0
    %42 = vmatprep.subr.mxu0 0.0
    %43 = vmatpush1.msra.mxu0 0.0
    %44 = vmatprep.subr.mxu0 0.0
    %45 = vmatpush1.msra.mxu0 0.0
    %46 = vmatprep.subr.mxu0 0.0
    %47 = vmatpush1.msra.mxu0 0.0
    %48 = vmatprep.subr.mxu0 0.0
    %49 = vmatpush1.msra.mxu0 0.0
    %50 = vmatprep.subr.mxu0 0.0
    %51 = vmatpush1.msra.mxu0 0.0
    %52 = vmatprep.subr.mxu0 0.0
    %53 = vmatpush1.msra.mxu0 0.0
    %54 = vmatprep.subr.mxu0 0.0
    %55 = vmatpush1.msra.mxu0 0.0
    %56 = vmatprep.subr.mxu0 0.0
    %57 = vmatpush1.msra.mxu0 0.0
    %58 = vmatprep.subr.mxu0 0.0
    %59 = vmatpush1.msra.mxu0 0.0
    %60 = vmatprep.subr.mxu0 0.0
    %61 = vmatpush1.msra.mxu0 0.0
    %62 = vmatprep.subr.mxu0 0.0
    %63 = vmatpush1.msra.mxu0 0.0
    %64 = vmatprep.subr.mxu0 0.0
    %65 = vmatpush1.msra.mxu0 0.0
    %66 = vmatprep.subr.mxu0 0.0
    %67 = vmatpush1.msra.mxu0 %v34
    %68 = vmatprep.subr.mxu0 0.0
    %69 = vmatpush2.msra.mxu0 0.0
    %70 = vmatprep.subr.mxu0 0.0
    %71 = vmatpush2.msra.mxu0 0.0
    %72 = vmatprep.subr.mxu0 0.0
    %73 = vmatpush2.msra.mxu0 0.0
    %74 = vmatprep.subr.mxu0 0.0
    %75 = vmatpush2.msra.mxu0 0.0
    %76 = vmatprep.subr.mxu0 0.0
    %77 = vmatpush2.msra.mxu0 0.0
    %78 = vmatprep.subr.mxu0 0.0
    %79 = vmatpush2.msra.mxu0 0.0
    %80 = vmatprep.subr.mxu0 0.0
    %81 = vmatpush2.msra.mxu0 0.0
    %82 = vmatprep.subr.mxu0 0.0
    %83 = vmatpush2.msra.mxu0 0.0
    %84 = vmatprep.subr.mxu0 0.0
    %85 = vmatpush2.msra.mxu0 0.0
    %86 = vmatprep.subr.mxu0 0.0
    %87 = vmatpush2.msra.mxu0 0.0
    %88 = vmatprep.subr.mxu0 0.0
    %89 = vmatpush2.msra.mxu0 0.0
    %90 = vmatprep.subr.mxu0 0.0
    %91 = vmatpush2.msra.mxu0 0.0
    %92 = vmatprep.subr.mxu0 0.0
    %93 = vmatpush2.msra.mxu0 0.0
    %94 = vmatprep.subr.mxu0 0.0
    %95 = vmatpush2.msra.mxu0 0.0
    %96 = vmatprep.subr.mxu0 0.0
    %97 = vmatpush2.msra.mxu0 0.0
    %98 = vmatprep.subr.mxu0 0.0
    %99 = vmatpush2.msra.mxu0 0.0
    %100 = vmatprep.mubr.f32.mxu0 0.0
    %101 = vmatmul.mubr.f32.gmra.mxu0 %v30
    %v102 = vpop.f32.mrf.mxu0
    %v103 = vadd.f32 0.0, %v102
    %v104 = vpop.f32.mrf.mxu0
    %105 = vdwg.mxu0
    %v106 = vld [vmem:[%s3] sm:$0x1]
    %v108 = vlaneseq
    %v109 = vshrl.u32 %v108, 7
    %v110 = vsub.s32 0, %v109
    %v111 = vrot.slane %v106, %v110
    %v113 = vmul.f32 %v26, %v111
    %v114 = vsel %vm28, %v113, 0.0
    %115 = vadd.xlane.f32.xlu0 %v114
    %v116 = vpop.xlane.xlu0 %115
    %v117 = vld [vmem:[%s0] sm:$0xff]
    %v118 = vmul.f32 %v103, %v116
    %v119 = vsub.f32 %v117, %v118
    %v120 = vmul.f32 %v119, %v119
    %vm121 = vcmask 261120
    %v122 = vsel %vm121, %v120, 0.0
    %123 = vadd.xlane.f32.xlu0 %v122
    %v124 = vpop.xlane.xlu0 %123
    %v125 = vrot.slane %v124, 4
    %v126 = vadd.f32 %v124, %v125
    %v127 = vrot.slane %v126, 2
    %v128 = vadd.f32 %v126, %v127
    %v129 = vrot.slane %v128, 1
    %v130 = vadd.f32 %v128, %v129
    %s131 = vtos %v130
    %v132 = vstv %s131
    %vm133 = vcmask 0
    %134 = vst.msk [vmem:[#allocation2] sm:$0x1] %vm133, %v132
    // Predicated region
    $region18: #{tpu_custom_call.1} parent=1 // pred_check
      _
    $region19: #{tpu_custom_call.1} parent=1 // pred_check_branch
      %136 = sbr.rel (0) target = $region21
    $region20: #{tpu_custom_call.1} parent=1 // pred_region
      %s138 = ssub.s32 16, 16
      %139 = vsyncadd [#allocation3], %s138
      %s141 = sshll.u32 [#allocation2], 4
      %s142 = int_to_ptr.vmem [resolvable:$true] %s141
      %144 = dma.vmem_to_hbm [thread:$0]  %s142, 16, %s4, [#allocation3]
    $region21: #{tpu_custom_call.1} parent=1 // pred_fallthru
      _
    // Predicated region
    $region22: #{tpu_custom_call.1} parent=1 // pred_check
      _
    $region23: #{tpu_custom_call.1} parent=1 // pred_check_branch
      %146 = sbr.rel (0) target = $region25
    $region24: #{tpu_custom_call.1} parent=1 // pred_region
      %147 = dma.done [#allocation3], 16
    $region25: #{tpu_custom_call.1} parent=1 // pred_fallthru
      _
    %148 = vsyncpa [#allocation3], 1

</llo_original>
